<compile_context>
chip_gen: v6e
topology: v6e:2x2x1
jax: 0.10.0
libtpu: 0.0.40
codegen_flags: <defaults>
</compile_context>

<pallas_src>
import functools

import jax
import jax.numpy as jnp
from jax.experimental import pallas as pl
from jax.experimental.pallas import tpu as pltpu


def _circ_conv_kernel(x_ref, w_ref, b_ref, o_ref, rhs_ref, xx_ref, *,
                      kernel_size, dilation, n_adj):
    # x_ref:   (C_in, L)        one batch element (grid axis 0 = batch)
    # w_ref:   (C_out, K*C_in)  flattened weight: column k*C_in + c = w[o, c, k]
    # b_ref:   (C_out, 1)       bias column
    # o_ref:   (C_out, L)       output block, native (B, C_out, L) layout
    # rhs_ref: (K*C_in, L)      scratch: stacked im2col RHS
    # xx_ref:  (C_in, 2*L)      scratch: doubled input (circular wrap helper)
    c_in, L = x_ref.shape
    p = n_adj * dilation

    xb = x_ref[...].astype(rhs_ref.dtype)          # (C_in, L)
    # Doubled copy along lanes: the circular wrap becomes a plain static slice.
    xx_ref[:, :L] = xb
    xx_ref[:, L:] = xb

    # rhs[k*C_in + c, l] = x[c, (l + k*dilation - p) mod L]
    # One contiguous slice read + one full-width store per tap.
    for k in range(kernel_size):
        s = (k * dilation - p) % L                 # static circular offset
        rhs_ref[k * c_in:(k + 1) * c_in, :] = xx_ref[:, s:s + L]

    # Single fused MXU matmul: (C_out, K*C_in) @ (K*C_in, L), f32 accumulate.
    acc = jnp.dot(w_ref[...], rhs_ref[...], preferred_element_type=jnp.float32)
    # Bias as a broadcast add in the epilogue (VPU slot).
    o_ref[...] = (acc + b_ref[...]).astype(o_ref.dtype)


def dilated_circ_conv(x, weight, bias, *, n_adj=4, dilation=1):
    """Pallas implementation of DilatedCircConv.forward(input, adj).

    x:      (B, C_in, L)   float32
    weight: (C_out, C_in, 2*n_adj+1)
    bias:   (C_out,)
    returns (B, C_out, L)
    """
    B, c_in, L = x.shape
    c_out, c_in_w, K = weight.shape
    assert c_in_w == c_in
    assert K == 2 * n_adj + 1
    p = n_adj * dilation
    # Circular-pad semantics (matching the torch.cat) are only well defined
    # when the pad does not exceed the length.
    assert p <= L

    F = K * c_in
    # Flatten weight so row order matches the stacked RHS: index k*C_in + c
    # holds w[o, c, k].
    w_flat = jnp.transpose(weight, (0, 2, 1)).reshape(c_out, F).astype(jnp.float32)
    bias2d = bias.reshape(c_out, 1).astype(jnp.float32)

    kernel = functools.partial(
        _circ_conv_kernel, kernel_size=K, dilation=dilation, n_adj=n_adj)

    return pl.pallas_call(
        kernel,
        out_shape=jax.ShapeDtypeStruct((B, c_out, L), x.dtype),
        grid_spec=pltpu.PrefetchScalarGridSpec(
            num_scalar_prefetch=0,
            grid=(B,),
            in_specs=[
                pl.BlockSpec((None, c_in, L), lambda b: (b, 0, 0)),   # x[b]
                pl.BlockSpec((c_out, F), lambda b: (0, 0)),           # weight
                pl.BlockSpec((c_out, 1), lambda b: (0, 0)),           # bias
            ],
            out_specs=pl.BlockSpec((None, c_out, L), lambda b: (b, 0, 0)),
            scratch_shapes=[
                pltpu.VMEM((F, L), jnp.float32),        # im2col RHS
                pltpu.VMEM((c_in, 2 * L), jnp.float32), # doubled input
            ],
        ),
        compiler_params=pltpu.CompilerParams(
            dimension_semantics=("parallel",),
        ),
    )(x, w_flat, bias2d)


def _reference(x, weight, bias, *, n_adj=4, dilation=1):
    # Pure-JAX reference mirroring the PyTorch semantics.
    p = n_adj * dilation
    if n_adj != 0:
        x = jnp.concatenate([x[..., -p:], x, x[..., :p]], axis=2)
    dn = jax.lax.conv_dimension_numbers(x.shape, weight.shape, ("NCH", "OIH", "NCH"))
    out = jax.lax.conv_general_dilated(
        x, weight, window_strides=(1,), padding="VALID",
        rhs_dilation=(dilation,), dimension_numbers=dn)
    return out + bias.reshape(1, -1, 1)


if __name__ == "__main__":
    # Module config: state_dim=4, out_state_dim=4, n_adj=4, dilation=1
    state_dim = 4
    out_state_dim = 4
    n_adj = 4
    dilation = 1
    K = 2 * n_adj + 1

    B, L = 2, 16

    key = jax.random.PRNGKey(0)
    kx, kw, kb = jax.random.split(key, 3)

    x = jax.random.normal(kx, (B, state_dim, L), dtype=jnp.float32)
    # Deterministic init mimicking nn.Conv1d default: U(-bound, bound), bound = 1/sqrt(C_in*K)
    bound = 1.0 / jnp.sqrt(jnp.float32(state_dim * K))
    weight = jax.random.uniform(kw, (out_state_dim, state_dim, K),
                                minval=-bound, maxval=bound, dtype=jnp.float32)
    bias = jax.random.uniform(kb, (out_state_dim,),
                              minval=-bound, maxval=bound, dtype=jnp.float32)

    adj = None  # adj is unused by DilatedCircConv.forward

    out = dilated_circ_conv(x, weight, bias, n_adj=n_adj, dilation=dilation)
    out = jax.block_until_ready(out)

    ref = _reference(x, weight, bias, n_adj=n_adj, dilation=dilation)
    assert out.shape == (B, out_state_dim, L)
    assert jnp.allclose(out, ref, atol=1e-5, rtol=1e-5), "mismatch vs reference"

    print("KERNEL_OK")
</pallas_src>

<mosaic_0001>
module attributes {stable_mosaic.version = 11 : i64} {
  func.func @_circ_conv_kernel(%arg0: i32, %arg1: memref<1x4x16xf32, #tpu.memory_space<vmem>>, %arg2: memref<4x36xf32, #tpu.memory_space<vmem>>, %arg3: memref<4x1xf32, #tpu.memory_space<vmem>>, %arg4: memref<1x4x16xf32, #tpu.memory_space<vmem>>, %arg5: memref<36x16xf32, #tpu.memory_space<vmem>>, %arg6: memref<4x32xf32, #tpu.memory_space<vmem>>) attributes {dimension_semantics = [#tpu.dimension_semantics<parallel>], iteration_bounds = array<i64: 2>, scalar_prefetch = 0 : i64, scratch_operands = 2 : i64, tpu.core_type = #tpu.core_type<tc>, window_params = [{transform_indices = @transform_0, window_bounds = array<i64: 1, 4, 16>}, {pipeline_mode = #tpu.pipeline_mode<synchronous>, transform_indices = @transform_1, window_bounds = array<i64: 4, 36>}, {pipeline_mode = #tpu.pipeline_mode<synchronous>, transform_indices = @transform_2, window_bounds = array<i64: 4, 1>}, {transform_indices = @transform_3, window_bounds = array<i64: 1, 4, 16>}]} {
    %c0 = arith.constant 0 : index
    %c0_0 = arith.constant 0 : index
    %c0_1 = arith.constant 0 : index
    %0 = vector.load %arg1[%c0, %c0_0, %c0_1] : memref<1x4x16xf32, #tpu.memory_space<vmem>>, vector<1x4x16xf32>
    %1 = vector.shape_cast %0 : vector<1x4x16xf32> to vector<4x16xf32>
    %c0_2 = arith.constant 0 : index
    %c0_3 = arith.constant 0 : index
    %2 = vector.load %arg6[%c0_2, %c0_3] : memref<4x32xf32, #tpu.memory_space<vmem>>, vector<4x16xf32>
    tpu.vector_store %arg6[%c0_2, %c0_3], %1 {strides = array<i32>} : memref<4x32xf32, #tpu.memory_space<vmem>>, vector<4x16xf32>,
    %c0_4 = arith.constant 0 : index
    %c16 = arith.constant 16 : index
    %3 = vector.load %arg6[%c0_4, %c16] : memref<4x32xf32, #tpu.memory_space<vmem>>, vector<4x16xf32>
    tpu.vector_store %arg6[%c0_4, %c16], %1 {strides = array<i32>} : memref<4x32xf32, #tpu.memory_space<vmem>>, vector<4x16xf32>,
    %c0_5 = arith.constant 0 : index
    %c12 = arith.constant 12 : index
    %4 = vector.load %arg6[%c0_5, %c12] : memref<4x32xf32, #tpu.memory_space<vmem>>, vector<4x16xf32>
    %c0_6 = arith.constant 0 : index
    %c0_7 = arith.constant 0 : index
    %5 = vector.load %arg5[%c0_6, %c0_7] : memref<36x16xf32, #tpu.memory_space<vmem>>, vector<4x16xf32>
    tpu.vector_store %arg5[%c0_6, %c0_7], %4 {strides = array<i32>} : memref<36x16xf32, #tpu.memory_space<vmem>>, vector<4x16xf32>,
    %c0_8 = arith.constant 0 : index
    %c13 = arith.constant 13 : index
    %6 = vector.load %arg6[%c0_8, %c13] : memref<4x32xf32, #tpu.memory_space<vmem>>, vector<4x16xf32>
    %c4 = arith.constant 4 : index
    %c0_9 = arith.constant 0 : index
    %7 = vector.load %arg5[%c4, %c0_9] : memref<36x16xf32, #tpu.memory_space<vmem>>, vector<4x16xf32>
    tpu.vector_store %arg5[%c4, %c0_9], %6 {strides = array<i32>} : memref<36x16xf32, #tpu.memory_space<vmem>>, vector<4x16xf32>,
    %c0_10 = arith.constant 0 : index
    %c14 = arith.constant 14 : index
    %8 = vector.load %arg6[%c0_10, %c14] : memref<4x32xf32, #tpu.memory_space<vmem>>, vector<4x16xf32>
    %c8 = arith.constant 8 : index
    %c0_11 = arith.constant 0 : index
    %9 = vector.load %arg5[%c8, %c0_11] : memref<36x16xf32, #tpu.memory_space<vmem>>, vector<4x16xf32>
    tpu.vector_store %arg5[%c8, %c0_11], %8 {strides = array<i32>} : memref<36x16xf32, #tpu.memory_space<vmem>>, vector<4x16xf32>,
    %c0_12 = arith.constant 0 : index
    %c15 = arith.constant 15 : index
    %10 = vector.load %arg6[%c0_12, %c15] : memref<4x32xf32, #tpu.memory_space<vmem>>, vector<4x16xf32>
    %c12_13 = arith.constant 12 : index
    %c0_14 = arith.constant 0 : index
    %11 = vector.load %arg5[%c12_13, %c0_14] : memref<36x16xf32, #tpu.memory_space<vmem>>, vector<4x16xf32>
    tpu.vector_store %arg5[%c12_13, %c0_14], %10 {strides = array<i32>} : memref<36x16xf32, #tpu.memory_space<vmem>>, vector<4x16xf32>,
    %c0_15 = arith.constant 0 : index
    %c0_16 = arith.constant 0 : index
    %12 = vector.load %arg6[%c0_15, %c0_16] : memref<4x32xf32, #tpu.memory_space<vmem>>, vector<4x16xf32>
    %c16_17 = arith.constant 16 : index
    %c0_18 = arith.constant 0 : index
    %13 = vector.load %arg5[%c16_17, %c0_18] : memref<36x16xf32, #tpu.memory_space<vmem>>, vector<4x16xf32>
    tpu.vector_store %arg5[%c16_17, %c0_18], %12 {strides = array<i32>} : memref<36x16xf32, #tpu.memory_space<vmem>>, vector<4x16xf32>,
    %c0_19 = arith.constant 0 : index
    %c1 = arith.constant 1 : index
    %14 = vector.load %arg6[%c0_19, %c1] : memref<4x32xf32, #tpu.memory_space<vmem>>, vector<4x16xf32>
    %c20 = arith.constant 20 : index
    %c0_20 = arith.constant 0 : index
    %15 = vector.load %arg5[%c20, %c0_20] : memref<36x16xf32, #tpu.memory_space<vmem>>, vector<4x16xf32>
    tpu.vector_store %arg5[%c20, %c0_20], %14 {strides = array<i32>} : memref<36x16xf32, #tpu.memory_space<vmem>>, vector<4x16xf32>,
    %c0_21 = arith.constant 0 : index
    %c2 = arith.constant 2 : index
    %16 = vector.load %arg6[%c0_21, %c2] : memref<4x32xf32, #tpu.memory_space<vmem>>, vector<4x16xf32>
    %c24 = arith.constant 24 : index
    %c0_22 = arith.constant 0 : index
    %17 = vector.load %arg5[%c24, %c0_22] : memref<36x16xf32, #tpu.memory_space<vmem>>, vector<4x16xf32>
    tpu.vector_store %arg5[%c24, %c0_22], %16 {strides = array<i32>} : memref<36x16xf32, #tpu.memory_space<vmem>>, vector<4x16xf32>,
    %c0_23 = arith.constant 0 : index
    %c3 = arith.constant 3 : index
    %18 = vector.load %arg6[%c0_23, %c3] : memref<4x32xf32, #tpu.memory_space<vmem>>, vector<4x16xf32>
    %c28 = arith.constant 28 : index
    %c0_24 = arith.constant 0 : index
    %19 = vector.load %arg5[%c28, %c0_24] : memref<36x16xf32, #tpu.memory_space<vmem>>, vector<4x16xf32>
    tpu.vector_store %arg5[%c28, %c0_24], %18 {strides = array<i32>} : memref<36x16xf32, #tpu.memory_space<vmem>>, vector<4x16xf32>,
    %c0_25 = arith.constant 0 : index
    %c4_26 = arith.constant 4 : index
    %20 = vector.load %arg6[%c0_25, %c4_26] : memref<4x32xf32, #tpu.memory_space<vmem>>, vector<4x16xf32>
    %c32 = arith.constant 32 : index
    %c0_27 = arith.constant 0 : index
    %21 = vector.load %arg5[%c32, %c0_27] : memref<36x16xf32, #tpu.memory_space<vmem>>, vector<4x16xf32>
    tpu.vector_store %arg5[%c32, %c0_27], %20 {strides = array<i32>} : memref<36x16xf32, #tpu.memory_space<vmem>>, vector<4x16xf32>,
    %c0_28 = arith.constant 0 : index
    %c0_29 = arith.constant 0 : index
    %22 = vector.load %arg2[%c0_28, %c0_29] : memref<4x36xf32, #tpu.memory_space<vmem>>, vector<4x36xf32>
    %c0_30 = arith.constant 0 : index
    %c0_31 = arith.constant 0 : index
    %23 = vector.load %arg5[%c0_30, %c0_31] : memref<36x16xf32, #tpu.memory_space<vmem>>, vector<36x16xf32>
    %cst = arith.constant dense<0.000000e+00> : vector<4x16xf32>
    %24 = tpu.matmul %22, %23, %cst {dimension_numbers = #tpu.dot_dimension_numbers<[1], [0], [0], [1], [0, 0, 1, 1], [], []>} : vector<4x36xf32>, vector<36x16xf32>, vector<4x16xf32> -> vector<4x16xf32>
    %c0_32 = arith.constant 0 : index
    %c0_33 = arith.constant 0 : index
    %25 = vector.load %arg3[%c0_32, %c0_33] : memref<4x1xf32, #tpu.memory_space<vmem>>, vector<4x1xf32>
    %26 = vector.broadcast %25 : vector<4x1xf32> to vector<4x16xf32>
    %27 = arith.addf %24, %26 : vector<4x16xf32>
    %c0_34 = arith.constant 0 : index
    %c0_35 = arith.constant 0 : index
    %c0_36 = arith.constant 0 : index
    %28 = vector.load %arg4[%c0_34, %c0_35, %c0_36] : memref<1x4x16xf32, #tpu.memory_space<vmem>>, vector<1x4x16xf32>
    %29 = vector.shape_cast %28 : vector<1x4x16xf32> to vector<4x16xf32>
    %30 = vector.shape_cast %27 : vector<4x16xf32> to vector<1x4x16xf32>
    tpu.vector_store %arg4[%c0_34, %c0_35, %c0_36], %30 {strides = array<i32>} : memref<1x4x16xf32, #tpu.memory_space<vmem>>, vector<1x4x16xf32>,
    return
  }
  func.func @transform_0(%arg0: i32) -> (i32, i32, i32) {
    %c0_i32 = arith.constant 0 : i32
    %c0_i32_0 = arith.constant 0 : i32
    %c0_i32_1 = arith.constant 0 : i32
    return %arg0, %c0_i32, %c0_i32_0 : i32, i32, i32
  }
  func.func @transform_1(%arg0: i32) -> (i32, i32) {
    %c0_i32 = arith.constant 0 : i32
    %c0_i32_0 = arith.constant 0 : i32
    %c0_i32_1 = arith.constant 0 : i32
    return %c0_i32, %c0_i32_0 : i32, i32
  }
  func.func @transform_2(%arg0: i32) -> (i32, i32) {
    %c0_i32 = arith.constant 0 : i32
    %c0_i32_0 = arith.constant 0 : i32
    %c0_i32_1 = arith.constant 0 : i32
    return %c0_i32, %c0_i32_0 : i32, i32
  }
  func.func @transform_3(%arg0: i32) -> (i32, i32, i32) {
    %c0_i32 = arith.constant 0 : i32
    %c0_i32_0 = arith.constant 0 : i32
    %c0_i32_1 = arith.constant 0 : i32
    return %arg0, %c0_i32, %c0_i32_0 : i32, i32, i32
  }
}

</mosaic_0001>

<llo_original>
// kernel: tpu_custom_call.1
$region0: #{tpu_custom_call.1}
  #allocation0 [shape = 'u32[]', space=smem, size = 0x4, offset = 0x4, fixed_abs, tag = 'smem constant byte address 0x4 - core index']
  #allocation1 [shape = 'u32[144,128]{1,0:T(1,128)}', space=vmem, size = 0x12000, scoped, tag = 'internal scratch']
  #allocation2 [shape = 'f32[36,16]{1,0:T(8,128)}', space=vmem, size = 0x5000, scoped, tag = 'scratch operand']
  #allocation3 [shape = 'f32[4,32]{1,0:T(4,128)}', space=vmem, size = 0x800, scoped, tag = 'scratch operand']
  %s0 = inlined_call_operand.hbm [shape: f32[2,4,16], index: 0, kind: input, shape index: {}]
  %s1 = inlined_call_operand.vmem [shape: f32[4,36], index: 1, kind: input, shape index: {}]
  %s2 = inlined_call_operand.vmem [shape: f32[4,1], index: 2, kind: input, shape index: {}]
  %s3 = inlined_call_operand.hbm [shape: f32[2,4,16], index: 3, kind: output, shape index: {}]
  %s4 = sld [smem:[#allocation0]]
  $region49: #{tpu_custom_call.1} parent=0
    _
  %s6 = ssub.s32 1, %s4
  %s7 = scalar_select 0, %s6, %s4
  $region1: #{tpu_custom_call.1} parent=0
    #allocation4 [shape = 'u8[4096]{0}', space=vmem, size = 0x1000, scoped, tag = 'input window, operand 0']
    #allocation5 [shape = 's32[2]{0}', space=sflag, size = 0x8, scoped, tag = 'scoped memory for tpu_custom_call.1']
    #allocation6 [shape = 's32[2]{0}', space=sflag, size = 0x8, scoped, tag = 'scoped memory for tpu_custom_call.1']
    #allocation7 [shape = 'u8[4096]{0}', space=vmem, size = 0x1000, scoped, tag = 'output window, operand 0']
    %8 = vsyncpa [#allocation5], 0
    %s9 = scalar_lea.sflag [#allocation5], 1
    %10 = vsyncpa %s9, 0
    %11 = vsyncpa [#allocation6], 0
    %s12 = scalar_lea.sflag [#allocation6], 1
    %13 = vsyncpa %s12, 0
    loop: start=0, step=1, limit=4
    $region2: #{tpu_custom_call.1} parent=1 // loop_pre_header
      _
    $region3: #{tpu_custom_call.1} parent=1 // loop_header
      %s15 = sphi 0, %s19
      %p16 = scmp.ge.s32.totalorder %s15, 4
      %s25 = sphi 0, %s27
      %s28 = sphi 0, %s25
      %s29 = sphi 0, %s28
      %s45 = sphi 0, %s29
      %s49 = sphi 0, %s49
      %s51 = sphi 0, %s49
      %s52 = sphi 0, %s51
      %s66 = sphi 0, %s52
      %s70 = sphi 0, %s70
      %s72 = sphi 0, %s70
      %s73 = sphi 0, %s72
      %s87 = sphi 0, %s73
      %s93 = sphi 0, %s95
      %s96 = sphi 0, %s93
      %s97 = sphi 0, %s96
      %s113 = sphi 0, %s97
    $region4: #{tpu_custom_call.1} parent=1 // loop_header_branch
      %18 = sbr.rel (%p16) target = $region8
    $region5: #{tpu_custom_call.1} parent=1 // loop_body
      %s20 = ssub.s32 %s15, 1
      %s21 = ssub.s32 %s15, 2
      %s22 = sadd.s32 %s15, 1
      %s23 = ssub.s32 %s15, %s22
      %p24 = scmp.eq.s32.totalorder %s23, 0
      %s26 = sadd.s32 %s25, 1
      %s27 = scalar_select %p24, %s25, %s26
      %p30 = pneg %p24
      %p31 = scmp.eq.s32.totalorder %s15, 1
      %p32 = por %p30, %p31
      %p33 = scmp.ne.s32.totalorder %s25, %s28
      %p34 = scmp.eq.s32.totalorder %s15, 0
      %p35 = por %p33, %p34
      %p36 = scmp.ne.s32.totalorder %s25, %s28
      %p37 = scmp.eq.s32.totalorder %s20, 1
      %p38 = por %p36, %p37
      %p39 = scmp.ne.s32.totalorder %s28, %s29
      %p40 = scmp.eq.s32.totalorder %s20, 0
      %p41 = por %p39, %p40
      %p42 = scmp.ne.s32.totalorder %s28, %s29
      %p43 = scmp.eq.s32.totalorder %s21, 1
      %p44 = por %p42, %p43
      %p46 = scmp.ne.s32.totalorder %s29, %s45
      %p47 = scmp.eq.s32.totalorder %s21, 0
      %p48 = por %p46, %p47
      %s50 = sadd.s32 %s49, 1
      %p53 = scmp.eq.s32.totalorder %s15, 1
      %p54 = scmp.ne.s32.totalorder %s49, %s51
      %p55 = scmp.eq.s32.totalorder %s15, 0
      %p56 = por %p54, %p55
      %p57 = scmp.ne.s32.totalorder %s49, %s51
      %p58 = scmp.eq.s32.totalorder %s20, 1
      %p59 = por %p57, %p58
      %p60 = scmp.ne.s32.totalorder %s51, %s52
      %p61 = scmp.eq.s32.totalorder %s20, 0
      %p62 = por %p60, %p61
      %p63 = scmp.ne.s32.totalorder %s51, %s52
      %p64 = scmp.eq.s32.totalorder %s21, 1
      %p65 = por %p63, %p64
      %p67 = scmp.ne.s32.totalorder %s52, %s66
      %p68 = scmp.eq.s32.totalorder %s21, 0
      %p69 = por %p67, %p68
      %s71 = sadd.s32 %s70, 1
      %p74 = scmp.eq.s32.totalorder %s15, 1
      %p75 = scmp.ne.s32.totalorder %s70, %s72
      %p76 = scmp.eq.s32.totalorder %s15, 0
      %p77 = por %p75, %p76
      %p78 = scmp.ne.s32.totalorder %s70, %s72
      %p79 = scmp.eq.s32.totalorder %s20, 1
      %p80 = por %p78, %p79
      %p81 = scmp.ne.s32.totalorder %s72, %s73
      %p82 = scmp.eq.s32.totalorder %s20, 0
      %p83 = por %p81, %p82
      %p84 = scmp.ne.s32.totalorder %s72, %s73
      %p85 = scmp.eq.s32.totalorder %s21, 1
      %p86 = por %p84, %p85
      %p88 = scmp.ne.s32.totalorder %s73, %s87
      %p89 = scmp.eq.s32.totalorder %s21, 0
      %p90 = por %p88, %p89
      %s91 = ssub.s32 %s15, %s22
      %p92 = scmp.eq.s32.totalorder %s91, 0
      %s94 = sadd.s32 %s93, 1
      %s95 = scalar_select %p92, %s93, %s94
      %p98 = pneg %p92
      %p99 = scmp.eq.s32.totalorder %s15, 1
      %p100 = por %p98, %p99
      %p101 = scmp.ne.s32.totalorder %s93, %s96
      %p102 = scmp.eq.s32.totalorder %s15, 0
      %p103 = por %p101, %p102
      %p104 = scmp.ne.s32.totalorder %s93, %s96
      %p105 = scmp.eq.s32.totalorder %s20, 1
      %p106 = por %p104, %p105
      %p107 = scmp.ne.s32.totalorder %s96, %s97
      %p108 = scmp.eq.s32.totalorder %s20, 0
      %p109 = por %p107, %p108
      %p110 = scmp.ne.s32.totalorder %s96, %s97
      %p111 = scmp.eq.s32.totalorder %s21, 1
      %p112 = por %p110, %p111
      %p114 = scmp.ne.s32.totalorder %s97, %s113
      %p115 = scmp.eq.s32.totalorder %s21, 0
      %p116 = por %p114, %p115
      %p117 = scmp.le.s32.totalorder 1, %s15
      %p118 = scmp.lt.s32.totalorder %s15, 3
      %p119 = pnand %p117, %p118
      %p120 = pneg %p119
      // Predicated region
      $region9: #{tpu_custom_call.1} parent=5 // pred_check
        _
      $region10: #{tpu_custom_call.1} parent=5 // pred_check_branch
        %122 = sbr.rel (%p119) target = $region12
      $region11: #{tpu_custom_call.1} parent=5 // pred_region
        %s123 = ssub.s32 %s15, 1
        // Predicated region
        $region13: #{tpu_custom_call.1} parent=11 // pred_check
          %p124 = pneg %p62
        $region14: #{tpu_custom_call.1} parent=11 // pred_check_branch
          %126 = sbr.rel (%p124) target = $region16
        $region15: #{tpu_custom_call.1} parent=11 // pred_region
          _
        $region16: #{tpu_custom_call.1} parent=11 // pred_fallthru
          _
        // Predicated region
        $region17: #{tpu_custom_call.1} parent=11 // pred_check
          %p127 = pneg %p83
        $region18: #{tpu_custom_call.1} parent=11 // pred_check_branch
          %129 = sbr.rel (%p127) target = $region20
        $region19: #{tpu_custom_call.1} parent=11 // pred_region
          _
        $region20: #{tpu_custom_call.1} parent=11 // pred_fallthru
          _
      $region12: #{tpu_custom_call.1} parent=5 // pred_fallthru
        _
      %p130 = scmp.lt.s32.totalorder %s15, 2
      // Predicated region
      $region21: #{tpu_custom_call.1} parent=5 // pred_check
        %p131 = pneg %p130
      $region22: #{tpu_custom_call.1} parent=5 // pred_check_branch
        %133 = sbr.rel (%p131) target = $region24
      $region23: #{tpu_custom_call.1} parent=5 // pred_region
        // Predicated region
        $region25: #{tpu_custom_call.1} parent=23 // pred_check
          %p134 = pneg %p35
        $region26: #{tpu_custom_call.1} parent=23 // pred_check_branch
          %136 = sbr.rel (%p134) target = $region28
        $region27: #{tpu_custom_call.1} parent=23 // pred_region
          %s137 = sand.u32 %s25, 1
          %s138 = scalar_lea.sflag [#allocation5], %s137
          %s139 = sand.u32 %s25, 1
          %s140 = smul.addr %s139, 4
          %s141 = scalar_lea.vmem [#allocation4], %s140
          %s143 = ssub.s32 64, 64
          %144 = vsyncadd %s138, %s143
          %s145 = smul.addr %s15, 64
          %s146 = scalar_lea.hbm %s0, %s145
          %s148 = sshll.u32 %s141, 4
          %s149 = int_to_ptr.vmem [resolvable:$true] %s148
          %151 = dma.hbm_to_vmem [thread:$0]  %s146, 64, %s149, %s138
        $region28: #{tpu_custom_call.1} parent=23 // pred_fallthru
          _
      $region24: #{tpu_custom_call.1} parent=5 // pred_fallthru
        _
      %p152 = scmp.le.s32.totalorder 1, %s15
      %p153 = scmp.lt.s32.totalorder %s15, 3
      %p154 = pnand %p152, %p153
      %p155 = pneg %p154
      // Predicated region
      $region29: #{tpu_custom_call.1} parent=5 // pred_check
        _
      $region30: #{tpu_custom_call.1} parent=5 // pred_check_branch
        %157 = sbr.rel (%p154) target = $region32
      $region31: #{tpu_custom_call.1} parent=5 // pred_region
        %s158 = ssub.s32 %s15, 1
        %s159 = sand.u32 %s28, 1
        %s160 = scalar_lea.sflag [#allocation5], %s159
        %s161 = sand.u32 %s28, 1
        %s162 = smul.addr %s161, 4
        %s163 = scalar_lea.vmem [#allocation4], %s162
        // Predicated region
        $region33: #{tpu_custom_call.1} parent=31 // pred_check
          %p164 = pneg %p41
        $region34: #{tpu_custom_call.1} parent=31 // pred_check_branch
          %166 = sbr.rel (%p164) target = $region36
        $region35: #{tpu_custom_call.1} parent=31 // pred_region
          %167 = dma.done %s160, 64
        $region36: #{tpu_custom_call.1} parent=31 // pred_fallthru
          _
        %s168 = sand.u32 %s28, 1
        %s169 = scalar_lea.sflag [#allocation5], %s168
        %s170 = sand.u32 %s28, 1
        %s171 = smul.addr %s170, 4
        %s172 = scalar_lea.vmem [#allocation4], %s171
        %p173 = pneg %p41
        %p174 = pneg %p38
        %p175 = pneg %p62
        %p176 = pneg %p59
        %p177 = pneg %p83
        %p178 = pneg %p80
        %p179 = pneg %p109
        %p180 = pneg %p106
        %s181 = sand.u32 %s96, 1
        %s182 = scalar_lea.sflag [#allocation6], %s181
        %s183 = sand.u32 %s96, 1
        %s184 = smul.addr %s183, 4
        %s185 = scalar_lea.vmem [#allocation7], %s184
        %v186 = vld [vmem:[%s163] sm:$0xf]
        %vm187 = vcmask 125952
        %188 = vst.msk [vmem:[#allocation3] sm:$0xf] %vm187, %v186
        %190 = vrot.lane.b32.xlu0 %v186, 16
        %v191 = vpop.permute.xlu0 %190
        %vm193 = vcmask 257152
        %194 = vst.msk [vmem:[#allocation3] sm:$0xf] %vm193, %v191
        %v195 = vld [vmem:[#allocation3] sm:$0xf]
        %197 = vrot.lane.b32.xlu0 %v195, 116
        %v198 = vpop.permute.xlu0 %197
        %200 = vst.msk [vmem:[#allocation2] sm:$0xf] %vm187, %v198
        %v201 = vld [vmem:[#allocation3] sm:$0xf]
        %203 = vrot.lane.b32.xlu0 %v201, 115
        %v204 = vpop.permute.xlu0 %203
        %206 = vst.msk [vmem:[#allocation2 + $0x4] sm:$0xf] %vm187, %v204
        %v207 = vld [vmem:[#allocation3] sm:$0xf]
        %209 = vrot.lane.b32.xlu0 %v207, 114
        %v210 = vpop.permute.xlu0 %209
        %212 = vst.msk [vmem:[#allocation2 + $0x8] sm:$0xf] %vm187, %v210
        %v213 = vld [vmem:[#allocation3] sm:$0xf]
        %215 = vrot.lane.b32.xlu0 %v213, 113
        %v216 = vpop.permute.xlu0 %215
        %218 = vst.msk [vmem:[#allocation2 + $0xc] sm:$0xf] %vm187, %v216
        %v219 = vld [vmem:[#allocation3] sm:$0xf]
        %220 = vst.msk [vmem:[#allocation2 + $0x10] sm:$0xf] %vm187, %v219
        %v221 = vld [vmem:[#allocation3] sm:$0xf]
        %223 = vrot.lane.b32.xlu0 %v221, 127
        %v224 = vpop.permute.xlu0 %223
        %226 = vst.msk [vmem:[#allocation2 + $0x14] sm:$0xf] %vm187, %v224
        %v227 = vld [vmem:[#allocation3] sm:$0xf]
        %229 = vrot.lane.b32.xlu0 %v227, 126
        %v230 = vpop.permute.xlu0 %229
        %232 = vst.msk [vmem:[#allocation2 + $0x18] sm:$0xf] %vm187, %v230
        %v233 = vld [vmem:[#allocation3] sm:$0xf]
        %235 = vrot.lane.b32.xlu0 %v233, 125
        %v236 = vpop.permute.xlu0 %235
        %238 = vst.msk [vmem:[#allocation2 + $0x1c] sm:$0xf] %vm187, %v236
        %v239 = vld [vmem:[#allocation3] sm:$0xf]
        %241 = vrot.lane.b32.xlu0 %v239, 124
        %v242 = vpop.permute.xlu0 %241
        %244 = vst.msk [vmem:[#allocation2 + $0x20] sm:$0xf] %vm187, %v242
        %v245 = vld [vmem:[%s1] sm:$0xf]
        %v246 = vld [vmem:[#allocation2] sm:$0xff]
        %v247 = vld [vmem:[#allocation2 + $0x8] sm:$0xff]
        %v248 = vld [vmem:[#allocation2 + $0x10] sm:$0xff]
        %v249 = vld [vmem:[#allocation2 + $0x18] sm:$0xff]
        %v250 = vld [vmem:[#allocation2 + $0x20] sm:$0xf]
        %v251 = vld [vmem:[%s2] sm:$0xf]
        %253 = vset.pattern.permute.xlu0 0
        %254 = vperm.xlu0 %253, %v251
        %v255 = vpop.permute.xlu0 %254
        %vm257 = vcmask 293888
        %v259 = vsel %vm257, %v245, 0
        %vm261 = vcmask 1043456
        %v263 = vsel %vm261, %v250, 0
        %265 = vmatprep.subr.mxu0 0.0
        %266 = vmatpush1.msra.mxu0 0.0
        %267 = vmatprep.subr.mxu0 0.0
        %268 = vmatpush1.msra.mxu0 0.0
        %269 = vmatprep.subr.mxu0 0.0
        %270 = vmatpush1.msra.mxu0 0.0
        %271 = vmatprep.subr.mxu0 0.0
        %272 = vmatpush1.msra.mxu0 0.0
        %273 = vmatprep.subr.mxu0 0.0
        %274 = vmatpush1.msra.mxu0 0.0
        %275 = vmatprep.subr.mxu0 0.0
        %276 = vmatpush1.msra.mxu0 0.0
        %277 = vmatprep.subr.mxu0 0.0
        %278 = vmatpush1.msra.mxu0 0.0
        %279 = vmatprep.subr.mxu0 0.0
        %280 = vmatpush1.msra.mxu0 0.0
        %281 = vmatprep.subr.mxu0 0.0
        %282 = vmatpush1.msra.mxu0 0.0
        %283 = vmatprep.subr.mxu0 0.0
        %284 = vmatpush1.msra.mxu0 0.0
        %285 = vmatprep.subr.mxu0 0.0
        %286 = vmatpush1.msra.mxu0 0.0
        %287 = vmatprep.subr.mxu0 0.0
        %288 = vmatpush1.msra.mxu0 %v263
        %289 = vmatprep.subr.mxu0 0.0
        %290 = vmatpush1.msra.mxu0 %v249
        %291 = vmatprep.subr.mxu0 0.0
        %292 = vmatpush1.msra.mxu0 %v248
        %293 = vmatprep.subr.mxu0 0.0
        %294 = vmatpush1.msra.mxu0 %v247
        %295 = vmatprep.subr.mxu0 0.0
        %296 = vmatpush1.msra.mxu0 %v246
        %297 = vmatprep.subr.mxu0 0.0
        %298 = vmatpush2.msra.mxu0 0.0
        %299 = vmatprep.subr.mxu0 0.0
        %300 = vmatpush2.msra.mxu0 0.0
        %301 = vmatprep.subr.mxu0 0.0
        %302 = vmatpush2.msra.mxu0 0.0
        %303 = vmatprep.subr.mxu0 0.0
        %304 = vmatpush2.msra.mxu0 0.0
        %305 = vmatprep.subr.mxu0 0.0
        %306 = vmatpush2.msra.mxu0 0.0
        %307 = vmatprep.subr.mxu0 0.0
        %308 = vmatpush2.msra.mxu0 0.0
        %309 = vmatprep.subr.mxu0 0.0
        %310 = vmatpush2.msra.mxu0 0.0
        %311 = vmatprep.subr.mxu0 0.0
        %312 = vmatpush2.msra.mxu0 0.0
        %313 = vmatprep.subr.mxu0 0.0
        %314 = vmatpush2.msra.mxu0 0.0
        %315 = vmatprep.subr.mxu0 0.0
        %316 = vmatpush2.msra.mxu0 0.0
        %317 = vmatprep.subr.mxu0 0.0
        %318 = vmatpush2.msra.mxu0 0.0
        %319 = vmatprep.subr.mxu0 0.0
        %320 = vmatpush2.msra.mxu0 0.0
        %321 = vmatprep.subr.mxu0 0.0
        %322 = vmatpush2.msra.mxu0 0.0
        %323 = vmatprep.subr.mxu0 0.0
        %324 = vmatpush2.msra.mxu0 0.0
        %325 = vmatprep.subr.mxu0 0.0
        %326 = vmatpush2.msra.mxu0 0.0
        %327 = vmatprep.subr.mxu0 0.0
        %328 = vmatpush2.msra.mxu0 0.0
        %329 = vmatprep.mubr.f32.mxu0 0.0
        %330 = vmatmul.mubr.f32.gmra.mxu0 %v259
        %v331 = vpop.f32.mrf.mxu0
        %v332 = vadd.f32 %v255, %v331
        %v333 = vpop.f32.mrf.mxu0
        %334 = vdwg.mxu0
        %335 = vst.msk [vmem:[%s185] sm:$0xf] %vm187, %v332
        %s336 = sand.u32 %s96, 1
        %s337 = scalar_lea.sflag [#allocation6], %s336
        %s338 = sand.u32 %s96, 1
        %s339 = smul.addr %s338, 4
        %s340 = scalar_lea.vmem [#allocation7], %s339
        // Predicated region
        $region37: #{tpu_custom_call.1} parent=31 // pred_check
          %p341 = pneg %p106
        $region38: #{tpu_custom_call.1} parent=31 // pred_check_branch
          %343 = sbr.rel (%p341) target = $region40
        $region39: #{tpu_custom_call.1} parent=31 // pred_region
          %s345 = ssub.s32 64, 64
          %346 = vsyncadd %s337, %s345
          %s347 = smul.addr %s20, 64
          %s348 = scalar_lea.hbm %s3, %s347
          %s350 = sshll.u32 %s340, 4
          %s351 = int_to_ptr.vmem [resolvable:$true] %s350
          %353 = dma.vmem_to_hbm [thread:$0]  %s351, 64, %s348, %s337
        $region40: #{tpu_custom_call.1} parent=31 // pred_fallthru
          _
      $region32: #{tpu_custom_call.1} parent=5 // pred_fallthru
        _
      %p354 = scmp.le.s32.totalorder 2, %s15
      // Predicated region
      $region41: #{tpu_custom_call.1} parent=5 // pred_check
        %p355 = pneg %p354
      $region42: #{tpu_custom_call.1} parent=5 // pred_check_branch
        %357 = sbr.rel (%p355) target = $region44
      $region43: #{tpu_custom_call.1} parent=5 // pred_region
        %s358 = ssub.s32 %s15, 2
        // Predicated region
        $region45: #{tpu_custom_call.1} parent=43 // pred_check
          %p359 = pneg %p112
        $region46: #{tpu_custom_call.1} parent=43 // pred_check_branch
          %361 = sbr.rel (%p359) target = $region48
        $region47: #{tpu_custom_call.1} parent=43 // pred_region
          %s362 = sand.u32 %s97, 1
          %s363 = scalar_lea.sflag [#allocation6], %s362
          %s364 = sand.u32 %s97, 1
          %s365 = smul.addr %s364, 4
          %s366 = scalar_lea.vmem [#allocation7], %s365
          %367 = dma.done %s363, 64
        $region48: #{tpu_custom_call.1} parent=43 // pred_fallthru
          _
      $region44: #{tpu_custom_call.1} parent=5 // pred_fallthru
        _
    $region6: #{tpu_custom_call.1} parent=1 // loop_footer
      %s19 = sadd.s32 1, %s15
    $region7: #{tpu_custom_call.1} parent=1 // loop_footer_branch
      %14 = sbr.rel target = $region3
    $region8: #{tpu_custom_call.1} parent=1 // loop_exit
      _
    %368 = vsyncpa [#allocation5], 1
    %s369 = scalar_lea.sflag [#allocation5], 1
    %370 = vsyncpa %s369, 1
    %371 = vsyncpa [#allocation6], 1
    %s372 = scalar_lea.sflag [#allocation6], 1
    %373 = vsyncpa %s372, 1

</llo_original>
